<compile_context>
chip_gen: v6e
topology: v6e:2x2x1
jax: 0.10.0
libtpu: 0.0.40
codegen_flags: <defaults>
</compile_context>

<pallas_src>
import functools

import numpy as np
import jax
import jax.numpy as jnp
from jax.experimental import pallas as pl
from jax.experimental.pallas import tpu as pltpu

_PAD_LANES = 128  # lane-dense output width (first 2 columns are x, y)


def _round_up(x, m):
    return (x + m - 1) // m * m


def _pick_tile_rows(rows, hw):
    """Row-tile: multiple of 8, <=256, and ~<=4 MiB per double-buffered tile."""
    by_vmem = max(8, ((4 * 1024 * 1024) // (hw * 4)) // 8 * 8)
    tile = min(256, by_vmem, _round_up(rows, 8))
    return max(8, tile)


def make_pos_buffers(height, width):
    """Exactly mirrors the PyTorch buffer construction (np.meshgrid + reshape)."""
    pos_x, pos_y = np.meshgrid(
        np.linspace(-1.0, 1.0, height), np.linspace(-1.0, 1.0, width)
    )
    pos_x = pos_x.reshape(height * width).astype(np.float32)
    pos_y = pos_y.reshape(height * width).astype(np.float32)
    return pos_x, pos_y


def spatial_softmax_kernel(x_ref, pos_ref, o_ref, *, inv_temperature):
    # x_ref: (TILE_R, HW), pos_ref: (HW, 128), o_ref: (TILE_R, 128)
    x = x_ref[...].astype(jnp.float32) * inv_temperature
    m = jnp.max(x, axis=-1, keepdims=True)
    e = jnp.exp(x - m)                                    # unnormalized softmax
    s = jnp.sum(e, axis=-1, keepdims=True)                # softmax denominator
    # Expected coordinates as a lane-dense MXU matmul (cols 2..127 are zero).
    acc = jnp.dot(e, pos_ref[...], preferred_element_type=jnp.float32)
    o_ref[...] = (acc / s).astype(o_ref.dtype)


def spatial_softmax_forward(feature, height, width, channel,
                            temperature=1.0, data_format='NCHW'):
    """feature: (N, C, H, W) float32 -> (N, 2*C) float32 keypoints."""
    if data_format == 'NHWC':
        feat2d = jnp.transpose(feature, (0, 2, 3, 1)).reshape(-1, height * width)
    else:
        feat2d = feature.reshape(-1, height * width)

    hw = height * width
    rows = feat2d.shape[0]                 # N * C
    n_batch = feature.shape[0]

    tile_r = _pick_tile_rows(rows, hw)
    rows_pad = _round_up(rows, tile_r)
    if rows_pad != rows:
        feat2d = jnp.pad(feat2d, ((0, rows_pad - rows), (0, 0)))

    # Position table, zero-padded to 128 lanes (columns 0/1 = pos_x/pos_y).
    pos_x, pos_y = make_pos_buffers(height, width)
    pos_pad = np.zeros((hw, _PAD_LANES), dtype=np.float32)
    pos_pad[:, 0] = pos_x
    pos_pad[:, 1] = pos_y
    pos_pad = jnp.asarray(pos_pad)

    grid = (rows_pad // tile_r,)
    kernel = functools.partial(
        spatial_softmax_kernel, inv_temperature=float(1.0 / temperature)
    )

    cost = pl.CostEstimate(
        flops=2 * rows_pad * hw * _PAD_LANES + 5 * rows_pad * hw,
        transcendentals=rows_pad * hw,
        bytes_accessed=4 * (rows_pad * hw + hw * _PAD_LANES + rows_pad * _PAD_LANES),
    )

    out_padded = pl.pallas_call(
        kernel,
        out_shape=jax.ShapeDtypeStruct((rows_pad, _PAD_LANES), jnp.float32),
        grid=grid,
        in_specs=[
            pl.BlockSpec((tile_r, hw), lambda i: (i, 0)),       # activations, tiled rows
            pl.BlockSpec((hw, _PAD_LANES), lambda i: (0, 0)),   # pos table, VMEM-resident
        ],
        out_specs=pl.BlockSpec((tile_r, _PAD_LANES), lambda i: (i, 0)),
        compiler_params=pltpu.CompilerParams(
            dimension_semantics=("parallel",),
        ),
        cost_estimate=cost,
    )(feat2d, pos_pad)

    expected_xy = out_padded[:rows, :2]                   # (N*C, 2) = [x, y]
    return expected_xy.reshape(n_batch, channel * 2)


def spatial_softmax_reference(feature, height, width, channel,
                              temperature=1.0, data_format='NCHW'):
    """Pure-JAX reference matching the PyTorch forward."""
    if data_format == 'NHWC':
        feat2d = jnp.transpose(feature, (0, 2, 3, 1)).reshape(-1, height * width)
    else:
        feat2d = feature.reshape(-1, height * width)
    pos_x, pos_y = make_pos_buffers(height, width)
    pos_x = jnp.asarray(pos_x)
    pos_y = jnp.asarray(pos_y)
    attn = jax.nn.softmax(feat2d / temperature, axis=-1)
    ex = jnp.sum(pos_x[None, :] * attn, axis=1, keepdims=True)
    ey = jnp.sum(pos_y[None, :] * attn, axis=1, keepdims=True)
    exy = jnp.concatenate([ex, ey], axis=1)
    return exy.reshape(-1, channel * 2)


if __name__ == "__main__":
    N, C, H, W = 2, 4, 16, 16
    temperature = 1.0  # module default (temperature=None -> 1.0)

    key = jax.random.PRNGKey(0)
    feature = jax.random.normal(key, (N, C, H, W), jnp.float32)

    out = spatial_softmax_forward(feature, H, W, C, temperature)
    out = jax.block_until_ready(out)

    ref = spatial_softmax_reference(feature, H, W, C, temperature)
    assert out.shape == (N, C * 2)
    assert jnp.allclose(out, ref, atol=1e-5, rtol=1e-5), (
        float(jnp.max(jnp.abs(out - ref)))
    )

    print("KERNEL_OK")
</pallas_src>

<mosaic_0001>
module attributes {stable_mosaic.version = 11 : i64} {
  func.func @spatial_softmax_kernel(%arg0: i32, %arg1: memref<8x256xf32, #tpu.memory_space<vmem>>, %arg2: memref<256x128xf32, #tpu.memory_space<vmem>>, %arg3: memref<8x128xf32, #tpu.memory_space<vmem>>) attributes {dimension_semantics = [#tpu.dimension_semantics<parallel>], iteration_bounds = array<i64: 1>, scalar_prefetch = 0 : i64, scratch_operands = 0 : i64, tpu.core_type = #tpu.core_type<tc>, window_params = [{transform_indices = @transform_0, window_bounds = array<i64: 8, 256>}, {pipeline_mode = #tpu.pipeline_mode<synchronous>, transform_indices = @transform_1, window_bounds = array<i64: 256, 128>}, {transform_indices = @transform_2, window_bounds = array<i64: 8, 128>}]} {
    %c0 = arith.constant 0 : index
    %c0_0 = arith.constant 0 : index
    %0 = vector.load %arg1[%c0, %c0_0] : memref<8x256xf32, #tpu.memory_space<vmem>>, vector<8x256xf32>
    %cst = arith.constant 1.000000e+00 : f32
    %1 = vector.broadcast %cst : f32 to vector<8x256xf32>
    %2 = arith.mulf %0, %1 : vector<8x256xf32>
    %cst_1 = arith.constant dense<0xFF800000> : vector<8xf32>
    %3 = vector.multi_reduction <maximumf>, %2, %cst_1 [1] : vector<8x256xf32> to vector<8xf32>
    %4 = vector.shape_cast %3 : vector<8xf32> to vector<8x1xf32>
    %5 = vector.broadcast %4 : vector<8x1xf32> to vector<8x256xf32>
    %6 = arith.subf %2, %5 : vector<8x256xf32>
    %7 = math.exp %6 : vector<8x256xf32>
    %cst_2 = arith.constant dense<0.000000e+00> : vector<8xf32>
    %8 = vector.multi_reduction <add>, %7, %cst_2 [1] : vector<8x256xf32> to vector<8xf32>
    %9 = vector.shape_cast %8 : vector<8xf32> to vector<8x1xf32>
    %c0_3 = arith.constant 0 : index
    %c0_4 = arith.constant 0 : index
    %10 = vector.load %arg2[%c0_3, %c0_4] : memref<256x128xf32, #tpu.memory_space<vmem>>, vector<256x128xf32>
    %cst_5 = arith.constant dense<0.000000e+00> : vector<8x128xf32>
    %11 = tpu.matmul %7, %10, %cst_5 {dimension_numbers = #tpu.dot_dimension_numbers<[1], [0], [0], [1], [0, 0, 1, 1], [], []>} : vector<8x256xf32>, vector<256x128xf32>, vector<8x128xf32> -> vector<8x128xf32>
    %12 = vector.broadcast %9 : vector<8x1xf32> to vector<8x128xf32>
    %13 = arith.divf %11, %12 : vector<8x128xf32>
    %c0_6 = arith.constant 0 : index
    %c0_7 = arith.constant 0 : index
    %14 = vector.load %arg3[%c0_6, %c0_7] : memref<8x128xf32, #tpu.memory_space<vmem>>, vector<8x128xf32>
    tpu.vector_store %arg3[%c0_6, %c0_7], %13 {strides = array<i32>} : memref<8x128xf32, #tpu.memory_space<vmem>>, vector<8x128xf32>,
    return
  }
  func.func @transform_0(%arg0: i32) -> (i32, i32) {
    %c0_i32 = arith.constant 0 : i32
    %c0_i32_0 = arith.constant 0 : i32
    return %arg0, %c0_i32 : i32, i32
  }
  func.func @transform_1(%arg0: i32) -> (i32, i32) {
    %c0_i32 = arith.constant 0 : i32
    %c0_i32_0 = arith.constant 0 : i32
    %c0_i32_1 = arith.constant 0 : i32
    return %c0_i32, %c0_i32_0 : i32, i32
  }
  func.func @transform_2(%arg0: i32) -> (i32, i32) {
    %c0_i32 = arith.constant 0 : i32
    %c0_i32_0 = arith.constant 0 : i32
    return %arg0, %c0_i32 : i32, i32
  }
}

</mosaic_0001>

<llo_original>
// kernel: tpu_custom_call.1
$region0: #{tpu_custom_call.1}
  #allocation0 [shape = 'u32[]', space=smem, size = 0x4, offset = 0x4, fixed_abs, tag = 'smem constant byte address 0x4 - core index']
  #allocation1 [shape = 'u32[144,128]{1,0:T(1,128)}', space=vmem, size = 0x12000, scoped, tag = 'internal scratch']
  %s0 = inlined_call_operand.hbm [shape: f32[8,256], index: 0, kind: input, shape index: {}]
  %s1 = inlined_call_operand.hbm [shape: f32[256,128], index: 1, kind: input, shape index: {}]
  %s2 = inlined_call_operand.hbm [shape: f32[8,128], index: 2, kind: output, shape index: {}]
  %s3 = sld [smem:[#allocation0]]
  $region26: #{tpu_custom_call.1} parent=0
    _
  %s5 = ssub.s32 1, %s3
  %s6 = scalar_select 0, %s5, %s3
  $region1: #{tpu_custom_call.1} parent=0
    #allocation2 [shape = 'u8[8192]{0}', space=vmem, size = 0x2000, scoped, tag = 'input window, operand 0, single buffered']
    #allocation3 [shape = 's32[1]{0}', space=sflag, size = 0x4, scoped, tag = 'scoped memory for tpu_custom_call.1']
    #allocation4 [shape = 's32[1]{0}', space=sflag, size = 0x4, scoped, tag = 'scoped memory for tpu_custom_call.1']
    #allocation5 [shape = 'u8[131072]{0}', space=vmem, size = 0x20000, scoped, tag = 'input window, operand 1, single buffered']
    #allocation6 [shape = 's32[1]{0}', space=sflag, size = 0x4, scoped, tag = 'scoped memory for tpu_custom_call.1']
    #allocation7 [shape = 'u8[4096]{0}', space=vmem, size = 0x1000, scoped, tag = 'output window, operand 0, single buffered']
    %7 = vsyncpa [#allocation3], 0
    %8 = vsyncpa [#allocation6], 0
    %9 = vsyncpa [#allocation4], 0
    // Predicated region
    $region2: #{tpu_custom_call.1} parent=1 // pred_check
      _
    $region3: #{tpu_custom_call.1} parent=1 // pred_check_branch
      %11 = sbr.rel (0) target = $region5
    $region4: #{tpu_custom_call.1} parent=1 // pred_region
      %s13 = ssub.s32 256, 256
      %14 = vsyncadd [#allocation3], %s13
      %s16 = sshll.u32 [#allocation2], 4
      %s17 = int_to_ptr.vmem [resolvable:$true] %s16
      %19 = dma.hbm_to_vmem [thread:$0]  %s0, 256, %s17, [#allocation3]
    $region5: #{tpu_custom_call.1} parent=1 // pred_fallthru
      _
    // Predicated region
    $region6: #{tpu_custom_call.1} parent=1 // pred_check
      _
    $region7: #{tpu_custom_call.1} parent=1 // pred_check_branch
      %21 = sbr.rel (0) target = $region9
    $region8: #{tpu_custom_call.1} parent=1 // pred_region
      %s23 = ssub.s32 4096, 4096
      %24 = vsyncadd [#allocation6], %s23
      %s25 = sshll.u32 [#allocation5], 4
      %s26 = int_to_ptr.vmem [resolvable:$true] %s25
      %31 = dma.hbm_to_vmem [thread:$0]  %s1, 4096, %s26, [#allocation6], 128, 128, 8
    $region9: #{tpu_custom_call.1} parent=1 // pred_fallthru
      _
    // Predicated region
    $region10: #{tpu_custom_call.1} parent=1 // pred_check
      _
    $region11: #{tpu_custom_call.1} parent=1 // pred_check_branch
      %33 = sbr.rel (0) target = $region13
    $region12: #{tpu_custom_call.1} parent=1 // pred_region
      %34 = dma.done [#allocation3], 256
    $region13: #{tpu_custom_call.1} parent=1 // pred_fallthru
      _
    // Predicated region
    $region14: #{tpu_custom_call.1} parent=1 // pred_check
      _
    $region15: #{tpu_custom_call.1} parent=1 // pred_check_branch
      %36 = sbr.rel (0) target = $region17
    $region16: #{tpu_custom_call.1} parent=1 // pred_region
      %37 = dma.done [#allocation6], 4096
    $region17: #{tpu_custom_call.1} parent=1 // pred_fallthru
      _
    %v38 = vld [vmem:[#allocation2] sm:$0xff]
    %v39 = vld [vmem:[#allocation2 + $0x8] sm:$0xff]
    %v40 = vmax.f32 %v38, %v39
    %41 = vmax.xlane.f32.xlu0 %v40
    %v42 = vpop.xlane.xlu0 %41
    %v43 = vsub.f32 %v38, %v42
    %v44 = vsub.f32 %v39, %v42
    %v45 = vmul.f32 %v43, 1.442695
    %v46 = vpow.pop %v45
    %v47 = vmul.f32 %v44, 1.442695
    %v48 = vpow.pop %v47
    %v49 = vadd.f32 %v46, %v48
    %50 = vadd.xlane.f32.xlu0 %v49
    %v51 = vpop.xlane.xlu0 %50
    %v52 = vld [vmem:[#allocation5] sm:$0xff]
    %v53 = vld [vmem:[#allocation5 + $0x8] sm:$0xff]
    %v54 = vld [vmem:[#allocation5 + $0x10] sm:$0xff]
    %v55 = vld [vmem:[#allocation5 + $0x18] sm:$0xff]
    %v56 = vld [vmem:[#allocation5 + $0x20] sm:$0xff]
    %v57 = vld [vmem:[#allocation5 + $0x28] sm:$0xff]
    %v58 = vld [vmem:[#allocation5 + $0x30] sm:$0xff]
    %v59 = vld [vmem:[#allocation5 + $0x38] sm:$0xff]
    %v60 = vld [vmem:[#allocation5 + $0x40] sm:$0xff]
    %v61 = vld [vmem:[#allocation5 + $0x48] sm:$0xff]
    %v62 = vld [vmem:[#allocation5 + $0x50] sm:$0xff]
    %v63 = vld [vmem:[#allocation5 + $0x58] sm:$0xff]
    %v64 = vld [vmem:[#allocation5 + $0x60] sm:$0xff]
    %v65 = vld [vmem:[#allocation5 + $0x68] sm:$0xff]
    %v66 = vld [vmem:[#allocation5 + $0x70] sm:$0xff]
    %v67 = vld [vmem:[#allocation5 + $0x78] sm:$0xff]
    %v68 = vld [vmem:[#allocation5 + $0x80] sm:$0xff]
    %v69 = vld [vmem:[#allocation5 + $0x88] sm:$0xff]
    %v70 = vld [vmem:[#allocation5 + $0x90] sm:$0xff]
    %v71 = vld [vmem:[#allocation5 + $0x98] sm:$0xff]
    %v72 = vld [vmem:[#allocation5 + $0xa0] sm:$0xff]
    %v73 = vld [vmem:[#allocation5 + $0xa8] sm:$0xff]
    %v74 = vld [vmem:[#allocation5 + $0xb0] sm:$0xff]
    %v75 = vld [vmem:[#allocation5 + $0xb8] sm:$0xff]
    %v76 = vld [vmem:[#allocation5 + $0xc0] sm:$0xff]
    %v77 = vld [vmem:[#allocation5 + $0xc8] sm:$0xff]
    %v78 = vld [vmem:[#allocation5 + $0xd0] sm:$0xff]
    %v79 = vld [vmem:[#allocation5 + $0xd8] sm:$0xff]
    %v80 = vld [vmem:[#allocation5 + $0xe0] sm:$0xff]
    %v81 = vld [vmem:[#allocation5 + $0xe8] sm:$0xff]
    %v82 = vld [vmem:[#allocation5 + $0xf0] sm:$0xff]
    %v83 = vld [vmem:[#allocation5 + $0xf8] sm:$0xff]
    %84 = vmatprep.subr.mxu0 0.0
    %85 = vmatpush1.msra.mxu0 %v67
    %86 = vmatprep.subr.mxu0 0.0
    %87 = vmatpush1.msra.mxu0 %v66
    %88 = vmatprep.subr.mxu0 0.0
    %89 = vmatpush1.msra.mxu0 %v65
    %90 = vmatprep.subr.mxu0 0.0
    %91 = vmatpush1.msra.mxu0 %v64
    %92 = vmatprep.subr.mxu0 0.0
    %93 = vmatpush1.msra.mxu0 %v63
    %94 = vmatprep.subr.mxu0 0.0
    %95 = vmatpush1.msra.mxu0 %v62
    %96 = vmatprep.subr.mxu0 0.0
    %97 = vmatpush1.msra.mxu0 %v61
    %98 = vmatprep.subr.mxu0 0.0
    %99 = vmatpush1.msra.mxu0 %v60
    %100 = vmatprep.subr.mxu0 0.0
    %101 = vmatpush1.msra.mxu0 %v59
    %102 = vmatprep.subr.mxu0 0.0
    %103 = vmatpush1.msra.mxu0 %v58
    %104 = vmatprep.subr.mxu0 0.0
    %105 = vmatpush1.msra.mxu0 %v57
    %106 = vmatprep.subr.mxu0 0.0
    %107 = vmatpush1.msra.mxu0 %v56
    %108 = vmatprep.subr.mxu0 0.0
    %109 = vmatpush1.msra.mxu0 %v55
    %110 = vmatprep.subr.mxu0 0.0
    %111 = vmatpush1.msra.mxu0 %v54
    %112 = vmatprep.subr.mxu0 0.0
    %113 = vmatpush1.msra.mxu0 %v53
    %114 = vmatprep.subr.mxu0 0.0
    %115 = vmatpush1.msra.mxu0 %v52
    %116 = vmatprep.subr.mxu0 0.0
    %117 = vmatpush2.msra.mxu0 %v83
    %118 = vmatprep.subr.mxu0 0.0
    %119 = vmatpush2.msra.mxu0 %v82
    %120 = vmatprep.subr.mxu0 0.0
    %121 = vmatpush2.msra.mxu0 %v81
    %122 = vmatprep.subr.mxu0 0.0
    %123 = vmatpush2.msra.mxu0 %v80
    %124 = vmatprep.subr.mxu0 0.0
    %125 = vmatpush2.msra.mxu0 %v79
    %126 = vmatprep.subr.mxu0 0.0
    %127 = vmatpush2.msra.mxu0 %v78
    %128 = vmatprep.subr.mxu0 0.0
    %129 = vmatpush2.msra.mxu0 %v77
    %130 = vmatprep.subr.mxu0 0.0
    %131 = vmatpush2.msra.mxu0 %v76
    %132 = vmatprep.subr.mxu0 0.0
    %133 = vmatpush2.msra.mxu0 %v75
    %134 = vmatprep.subr.mxu0 0.0
    %135 = vmatpush2.msra.mxu0 %v74
    %136 = vmatprep.subr.mxu0 0.0
    %137 = vmatpush2.msra.mxu0 %v73
    %138 = vmatprep.subr.mxu0 0.0
    %139 = vmatpush2.msra.mxu0 %v72
    %140 = vmatprep.subr.mxu0 0.0
    %141 = vmatpush2.msra.mxu0 %v71
    %142 = vmatprep.subr.mxu0 0.0
    %143 = vmatpush2.msra.mxu0 %v70
    %144 = vmatprep.subr.mxu0 0.0
    %145 = vmatpush2.msra.mxu0 %v69
    %146 = vmatprep.subr.mxu0 0.0
    %147 = vmatpush2.msra.mxu0 %v68
    %148 = vmatprep.mubr.f32.mxu0 %v48
    %149 = vmatmul.mubr.f32.gmra.mxu0 %v46
    %v150 = vpop.f32.mrf.mxu0
    %v151 = vadd.f32 0.0, %v150
    %v152 = vpop.f32.mrf.mxu0
    %153 = vdwg.mxu0
    %v154 = vrcp.pop %v51
    %v155 = vmul.f32 %v151, %v154
    %156 = vst [vmem:[#allocation7] sm:$0xff] %v155
    // Predicated region
    $region18: #{tpu_custom_call.1} parent=1 // pred_check
      _
    $region19: #{tpu_custom_call.1} parent=1 // pred_check_branch
      %158 = sbr.rel (0) target = $region21
    $region20: #{tpu_custom_call.1} parent=1 // pred_region
      %s160 = ssub.s32 128, 128
      %161 = vsyncadd [#allocation4], %s160
      %s163 = sshll.u32 [#allocation7], 4
      %s164 = int_to_ptr.vmem [resolvable:$true] %s163
      %166 = dma.vmem_to_hbm [thread:$0]  %s164, 128, %s2, [#allocation4]
    $region21: #{tpu_custom_call.1} parent=1 // pred_fallthru
      _
    // Predicated region
    $region22: #{tpu_custom_call.1} parent=1 // pred_check
      _
    $region23: #{tpu_custom_call.1} parent=1 // pred_check_branch
      %168 = sbr.rel (0) target = $region25
    $region24: #{tpu_custom_call.1} parent=1 // pred_region
      %169 = dma.done [#allocation4], 128
    $region25: #{tpu_custom_call.1} parent=1 // pred_fallthru
      _
    %170 = vsyncpa [#allocation3], 1
    %171 = vsyncpa [#allocation6], 1
    %172 = vsyncpa [#allocation4], 1

</llo_original>
